<compile_context>
chip_gen: v5e
topology: v5e:2x2
jax: 0.10.0
libtpu: 0.0.40
codegen_flags: <defaults>
</compile_context>

<pallas_src>
import functools

import jax
import jax.numpy as jnp
from jax.experimental import pallas as pl
from jax.experimental.pallas import tpu as pltpu


def _focal_loss_kernel(x_ref, t_ref, psum_ref, *, gamma, ignore_index,
                       n_pixels, tile_p):
    """Partial focal-loss sum for one (batch-element, pixel-tile) block.

    x_ref:    (C, tile_p)  logits (classes on sublanes, pixels on lanes)
    t_ref:    (1, tile_p)  integer targets (any int dtype; widened here)
    psum_ref: (1, 128)     f32; lane 0 holds this block's loss sum, rest 0
    """
    x = x_ref[...].astype(jnp.float32)                     # (C, TP)
    t = t_ref[...].astype(jnp.int32)                       # (1, TP)

    # Valid = real pixel (the last tile along the pixel axis may run past the
    # image) AND not ignore_index.  Invalid lanes are forced to 0 before the
    # reduction, so garbage from out-of-bounds tail reads never matters.
    col = pl.program_id(1) * tile_p + jax.lax.broadcasted_iota(
        jnp.int32, t.shape, 1)                             # (1, TP)
    valid = (t != ignore_index) & (col < n_pixels)

    # Numerically stable softmax pieces, reduced over the class (sublane) axis.
    m = jnp.max(x, axis=0, keepdims=True)                  # (1, TP)
    e = jnp.exp(x - m)                                     # (C, TP), in (0, 1]
    denom = jnp.sum(e, axis=0, keepdims=True)              # (1, TP), >= 1

    # Target-class probability via a single one-hot select (no dynamic gather;
    # the old x_t select + second sublane reduce were dropped -- logpt is
    # recovered from e_t instead, trimming the VALU-heavy path).
    classes = jax.lax.broadcasted_iota(jnp.int32, x.shape, 0)   # (C, TP)
    e_t = jnp.sum(jnp.where(classes == t, e, 0.0), axis=0, keepdims=True)
    # Clamp guards exp underflow (x_t - m < ~-87): log stays finite, logpt is
    # merely capped at ~log(denom)+85 instead of going to inf.
    e_t = jnp.maximum(e_t, 1e-37)

    # Cross-entropy: logpt = logsumexp(x) - x[t] = log(denom) - log(e_t) >= 0.
    # pt = softmax(x)[t] = e_t / denom (reuses the exponentials; <= 1).
    logpt = jnp.log(denom) - jnp.log(e_t)
    # approx=True reciprocal is too coarse for the 1e-5 test tolerance.
    pt = e_t * pl.reciprocal(denom, approx=False)

    w = 1.0 - pt
    g = float(gamma)
    if g == 2.0:                        # default: explicit square, no float pow
        focal = w * w
    elif g == float(int(g)) and int(g) >= 0:
        focal = jnp.ones_like(w)
        for _ in range(int(g)):         # small static unroll for integer gamma
            focal = focal * w
    else:
        focal = jnp.power(jnp.maximum(w, 0.0), g)

    loss = jnp.where(valid, focal * logpt, 0.0)             # (1, TP)

    # Fused reduction: one partial sum per grid step (lane reduce -> XLU slot),
    # written into lane 0 of a tiny lane-dense block.  This removes the
    # per-pixel HBM writeback + separate XLA reduction kernel entirely.
    s = jnp.sum(loss, axis=1, keepdims=True)                # (1, 1)
    lane = jax.lax.broadcasted_iota(jnp.int32, (1, 128), 1)
    psum_ref[...] = jnp.where(lane == 0, s, 0.0).astype(psum_ref.dtype)


def _pick_tile_p(C, HW, itemsize, N):
    """Pixel-tile size (lanes per block).

    Sized from the *actual* logits dtype so bf16 inputs keep the intended DMA
    granule.  The budget counts everything live in VMEM per pixel:
      2*C*itemsize   double-buffered logits block
      2*C*4          f32 upcast of x plus the exp() temporary
      2*4            double-buffered int32 targets
      ~40            handful of (1, tile_p) f32/int32 temporaries
    and keeps the total under ~20 MiB of the 32 MiB scoped limit (safe on
    v5e/v6e's 128 MiB parts and v7x's 64 MiB parts alike).  The logits DMA
    itself is also capped at ~8 MiB (past the measured roofline plateau) and
    the lane count at 128K to bound the fully-unrolled vector code Mosaic
    emits per block (raised from the old 64K cap that limited small-C blocks
    to ~1 MiB).
    """
    vmem_budget = 20 * 1024 * 1024
    max_block_bytes = 8 * 1024 * 1024
    per_pixel = 2 * C * itemsize + 2 * C * 4 + 2 * 4 + 40
    tp = min(vmem_budget // per_pixel,
             max_block_bytes // (C * itemsize),
             128 * 1024)
    tp = max(128, (tp // 128) * 128)
    # Keep the block inside the array: only the final tile is partial.
    hw128 = max(128, (HW // 128) * 128)
    tp = min(tp, hw128)
    # v7x megacore: with an odd batch, split the pixel axis into >= 2 tiles so
    # both TensorCores get work (single-TC v5e/v6e are unaffected).
    if N % 2 == 1 and HW >= 256:
        half = max(128, ((HW + 255) // 256) * 128)   # ~ceil(HW/2), 128-aligned
        tp = min(tp, half)
    return int(tp)


def focal_loss(output_nchw, target_nhw, *, gamma=2.0, alpha=None,
               ignore_index=255, size_average=True, tile_p=None):
    """JAX/Pallas equivalent of FocalLoss.forward(output, target).

    `output_nchw` may be float32 or bfloat16 (bf16 halves the dominant HBM
    read; the kernel upcasts internally).  `target_nhw` may be any integer
    dtype <= 32 bits and is passed through without a wrapper-side cast.
    """
    # TODO(synk): per-class `alpha` weights (CrossEntropyLoss(weight=alpha)) are
    # not implemented; the module's default is alpha=None.
    if alpha is not None:
        raise NotImplementedError("alpha (per-class weights) not supported")

    N, C, H, W = output_nchw.shape
    HW = H * W
    itemsize = jnp.dtype(output_nchw.dtype).itemsize
    if tile_p is None:
        tile_p = _pick_tile_p(C, HW, itemsize, N)

    # Free reshapes only -- no NCHW->NHWC relayout, no padded copy of logits.
    x3 = output_nchw.reshape(N, C, HW)
    t = target_nhw
    if (not jnp.issubdtype(t.dtype, jnp.integer)) or jnp.dtype(t.dtype).itemsize > 4:
        t = t.astype(jnp.int32)          # only for bool / 64-bit oddballs
    t3 = t.reshape(N, 1, HW)

    HW_k = HW
    if HW < tile_p:
        # Rare small-image fallback (HW < 128): pad the pixel axis once so the
        # block fits; padded pixels are masked in-kernel via `col < HW`.
        pad = tile_p - HW
        x3 = jnp.pad(x3, ((0, 0), (0, 0), (0, pad)))
        t3 = jnp.pad(t3, ((0, 0), (0, 0), (0, pad)),
                     constant_values=ignore_index)
        HW_k = tile_p

    n_tiles = pl.cdiv(HW_k, tile_p)

    kernel = functools.partial(_focal_loss_kernel, gamma=gamma,
                               ignore_index=ignore_index, n_pixels=HW,
                               tile_p=tile_p)

    # One lane-dense (1, 128) partial-sum block per grid step; every output
    # block is owned by exactly one step, so both grid axes stay "parallel"
    # (megacore-safe) with no accumulator aliasing.
    partial_sums = pl.pallas_call(
        kernel,
        out_shape=jax.ShapeDtypeStruct((N, n_tiles, 1, 128), jnp.float32),
        grid_spec=pltpu.PrefetchScalarGridSpec(
            num_scalar_prefetch=0,
            grid=(N, n_tiles),
            in_specs=[
                pl.BlockSpec((None, C, tile_p), lambda n, j: (n, 0, j)),
                pl.BlockSpec((None, 1, tile_p), lambda n, j: (n, 0, j)),
            ],
            out_specs=pl.BlockSpec((None, None, 1, 128),
                                   lambda n, j: (n, j, 0, 0)),
        ),
        compiler_params=pltpu.CompilerParams(
            dimension_semantics=("parallel", "parallel"),
            vmem_limit_bytes=32 * 1024 * 1024,
        ),
    )(x3, t3)

    total = jnp.sum(partial_sums)          # tiny: N * n_tiles * 128 floats
    if size_average:
        # PyTorch: loss.mean() over ALL N*H*W elements (CrossEntropyLoss with
        # reduce=False zeros ignored pixels but they still count in the mean).
        return total / jnp.float32(N * HW)
    return total


def _focal_loss_ref(output_nchw, target_nhw, gamma=2.0, ignore_index=255,
                    size_average=True):
    """Pure-JAX reference mirroring the PyTorch module."""
    N, C, H, W = output_nchw.shape
    x = jnp.transpose(output_nchw, (0, 2, 3, 1)).reshape(-1, C).astype(jnp.float32)
    t = target_nhw.reshape(-1).astype(jnp.int32)
    lse = jax.nn.logsumexp(x, axis=-1)
    safe_t = jnp.where(t == ignore_index, 0, t)
    logit_t = jnp.take_along_axis(x, safe_t[:, None], axis=-1)[:, 0]
    logpt = lse - logit_t
    pt = jnp.exp(-logpt)
    loss = (1.0 - pt) ** gamma * logpt
    loss = jnp.where(t == ignore_index, 0.0, loss)
    return jnp.mean(loss) if size_average else jnp.sum(loss)


if __name__ == "__main__":
    key = jax.random.PRNGKey(0)
    k1, k2, k3 = jax.random.split(key, 3)

    N, C, H, W = 2, 4, 16, 16
    logits = jax.random.normal(k1, (N, C, H, W), dtype=jnp.float32)
    target = jax.random.randint(k2, (N, H, W), 0, C, dtype=jnp.int32)
    # Sprinkle in some ignore_index pixels to exercise the masking path.
    ignore_mask = jax.random.bernoulli(k3, 0.1, (N, H, W))
    target = jnp.where(ignore_mask, 255, target)

    out_mean = jax.block_until_ready(focal_loss(logits, target))
    ref_mean = _focal_loss_ref(logits, target)
    assert jnp.allclose(out_mean, ref_mean, rtol=2e-5, atol=1e-6), (out_mean, ref_mean)

    out_sum = jax.block_until_ready(focal_loss(logits, target, size_average=False))
    ref_sum = _focal_loss_ref(logits, target, size_average=False)
    assert jnp.allclose(out_sum, ref_sum, rtol=2e-5, atol=1e-4), (out_sum, ref_sum)

    print("KERNEL_OK")
</pallas_src>

<mosaic_0001>
module attributes {stable_mosaic.version = 11 : i64} {
  func.func @_focal_loss_kernel(%arg0: i32, %arg1: i32, %arg2: memref<1x4x256xf32, #tpu.memory_space<vmem>>, %arg3: memref<1x1x256xi32, #tpu.memory_space<vmem>>, %arg4: memref<1x1x1x128xf32, #tpu.memory_space<vmem>>) attributes {dimension_semantics = [#tpu.dimension_semantics<parallel>, #tpu.dimension_semantics<parallel>], iteration_bounds = array<i64: 2, 1>, scalar_prefetch = 0 : i64, scratch_operands = 0 : i64, tpu.core_type = #tpu.core_type<tc>, window_params = [{transform_indices = @transform_0, window_bounds = array<i64: 1, 4, 256>}, {transform_indices = @transform_1, window_bounds = array<i64: 1, 1, 256>}, {transform_indices = @transform_2, window_bounds = array<i64: 1, 1, 1, 128>}]} {
    %c0 = arith.constant 0 : index
    %c0_0 = arith.constant 0 : index
    %c0_1 = arith.constant 0 : index
    %0 = vector.load %arg2[%c0, %c0_0, %c0_1] : memref<1x4x256xf32, #tpu.memory_space<vmem>>, vector<1x4x256xf32>
    %1 = vector.shape_cast %0 : vector<1x4x256xf32> to vector<4x256xf32>
    %c0_2 = arith.constant 0 : index
    %c0_3 = arith.constant 0 : index
    %c0_4 = arith.constant 0 : index
    %2 = vector.load %arg3[%c0_2, %c0_3, %c0_4] : memref<1x1x256xi32, #tpu.memory_space<vmem>>, vector<1x1x256xi32>
    %3 = vector.shape_cast %2 : vector<1x1x256xi32> to vector<1x256xi32>
    %c256_i32 = arith.constant 256 : i32
    %4 = arith.muli %arg1, %c256_i32 : i32
    %5 = tpu.iota {dimensions = array<i32: 1>} : vector<1x256xi32>
    %6 = vector.broadcast %4 : i32 to vector<1x256xi32>
    %7 = arith.addi %6, %5 : vector<1x256xi32>
    %c255_i32 = arith.constant 255 : i32
    %8 = vector.broadcast %c255_i32 : i32 to vector<1x256xi32>
    %9 = arith.cmpi ne, %3, %8 : vector<1x256xi32>
    %c256_i32_5 = arith.constant 256 : i32
    %10 = vector.broadcast %c256_i32_5 : i32 to vector<1x256xi32>
    %11 = arith.cmpi slt, %7, %10 : vector<1x256xi32>
    %12 = arith.andi %9, %11 : vector<1x256xi1>
    %cst = arith.constant dense<0xFF800000> : vector<256xf32>
    %13 = vector.multi_reduction <maximumf>, %1, %cst [0] : vector<4x256xf32> to vector<256xf32>
    %14 = vector.shape_cast %13 : vector<256xf32> to vector<1x256xf32>
    %15 = vector.broadcast %14 : vector<1x256xf32> to vector<4x256xf32>
    %16 = arith.subf %1, %15 : vector<4x256xf32>
    %17 = math.exp %16 : vector<4x256xf32>
    %cst_6 = arith.constant dense<0.000000e+00> : vector<256xf32>
    %18 = vector.multi_reduction <add>, %17, %cst_6 [0] : vector<4x256xf32> to vector<256xf32>
    %19 = vector.shape_cast %18 : vector<256xf32> to vector<1x256xf32>
    %20 = tpu.iota {dimensions = array<i32: 0>} : vector<4x256xi32>
    %21 = vector.broadcast %3 : vector<1x256xi32> to vector<4x256xi32>
    %22 = arith.cmpi eq, %20, %21 : vector<4x256xi32>
    %cst_7 = arith.constant 0.000000e+00 : f32
    %23 = vector.broadcast %cst_7 : f32 to vector<4x256xf32>
    %24 = arith.select %22, %17, %23 : vector<4x256xi1>, vector<4x256xf32>
    %cst_8 = arith.constant dense<0.000000e+00> : vector<256xf32>
    %25 = vector.multi_reduction <add>, %24, %cst_8 [0] : vector<4x256xf32> to vector<256xf32>
    %26 = vector.shape_cast %25 : vector<256xf32> to vector<1x256xf32>
    %cst_9 = arith.constant 9.99999991E-38 : f32
    %27 = vector.broadcast %cst_9 : f32 to vector<1x256xf32>
    %28 = arith.maximumf %26, %27 : vector<1x256xf32>
    %29 = math.log %19 : vector<1x256xf32>
    %30 = math.log %28 : vector<1x256xf32>
    %31 = arith.subf %29, %30 : vector<1x256xf32>
    %32 = tpu.reciprocal %19 : vector<1x256xf32> -> vector<1x256xf32>
    %33 = arith.mulf %28, %32 : vector<1x256xf32>
    %cst_10 = arith.constant 1.000000e+00 : f32
    %34 = vector.broadcast %cst_10 : f32 to vector<1x256xf32>
    %35 = arith.subf %34, %33 : vector<1x256xf32>
    %36 = arith.mulf %35, %35 : vector<1x256xf32>
    %37 = arith.mulf %36, %31 : vector<1x256xf32>
    %cst_11 = arith.constant 0.000000e+00 : f32
    %38 = vector.broadcast %cst_11 : f32 to vector<1x256xf32>
    %39 = arith.select %12, %37, %38 : vector<1x256xi1>, vector<1x256xf32>
    %cst_12 = arith.constant dense<0.000000e+00> : vector<1xf32>
    %40 = vector.multi_reduction <add>, %39, %cst_12 [1] : vector<1x256xf32> to vector<1xf32>
    %41 = vector.shape_cast %40 : vector<1xf32> to vector<1x1xf32>
    %42 = tpu.iota {dimensions = array<i32: 1>} : vector<1x128xi32>
    %c0_i32 = arith.constant 0 : i32
    %43 = vector.broadcast %c0_i32 : i32 to vector<1x128xi32>
    %44 = arith.cmpi eq, %42, %43 : vector<1x128xi32>
    %cst_13 = arith.constant 0.000000e+00 : f32
    %45 = vector.shape_cast %41 : vector<1x1xf32> to vector<1x1xf32>
    %46 = vector.broadcast %45 : vector<1x1xf32> to vector<1x128xf32>
    %47 = vector.broadcast %cst_13 : f32 to vector<1x128xf32>
    %48 = arith.select %44, %46, %47 : vector<1x128xi1>, vector<1x128xf32>
    %c0_14 = arith.constant 0 : index
    %c0_15 = arith.constant 0 : index
    %c0_16 = arith.constant 0 : index
    %c0_17 = arith.constant 0 : index
    %49 = vector.load %arg4[%c0_14, %c0_15, %c0_16, %c0_17] : memref<1x1x1x128xf32, #tpu.memory_space<vmem>>, vector<1x1x1x128xf32>
    %50 = vector.shape_cast %49 : vector<1x1x1x128xf32> to vector<1x128xf32>
    %51 = vector.shape_cast %48 : vector<1x128xf32> to vector<1x1x1x128xf32>
    tpu.vector_store %arg4[%c0_14, %c0_15, %c0_16, %c0_17], %51 {strides = array<i32>} : memref<1x1x1x128xf32, #tpu.memory_space<vmem>>, vector<1x1x1x128xf32>,
    return
  }
  func.func @transform_0(%arg0: i32, %arg1: i32) -> (i32, i32, i32) {
    %c0_i32 = arith.constant 0 : i32
    %c0_i32_0 = arith.constant 0 : i32
    return %arg0, %c0_i32, %arg1 : i32, i32, i32
  }
  func.func @transform_1(%arg0: i32, %arg1: i32) -> (i32, i32, i32) {
    %c0_i32 = arith.constant 0 : i32
    %c0_i32_0 = arith.constant 0 : i32
    return %arg0, %c0_i32, %arg1 : i32, i32, i32
  }
  func.func @transform_2(%arg0: i32, %arg1: i32) -> (i32, i32, i32, i32) {
    %c0_i32 = arith.constant 0 : i32
    %c0_i32_0 = arith.constant 0 : i32
    %c0_i32_1 = arith.constant 0 : i32
    return %arg0, %arg1, %c0_i32, %c0_i32_0 : i32, i32, i32, i32
  }
}

</mosaic_0001>

<llo_original>
// kernel: tpu_custom_call.1
$region0: #{tpu_custom_call.1}
  #allocation0 [shape = 'u32[]', space=smem, size = 0x4, offset = 0x4, fixed_abs, tag = 'smem constant byte address 0x4 - core index']
  #allocation1 [shape = 'u32[72,128]{1,0:T(1,128)}', space=vmem, size = 0x9000, scoped, tag = 'internal scratch']
  %s0 = inlined_call_operand.hbm [shape: f32[2,4,256], index: 0, kind: input, shape index: {}]
  %s1 = inlined_call_operand.hbm [shape: s32[2,1,256], index: 1, kind: input, shape index: {}]
  %s2 = inlined_call_operand.hbm [shape: f32[2,1,1,128], index: 2, kind: output, shape index: {}]
  %s3 = sld [smem:[#allocation0]]
  $region49: #{tpu_custom_call.1} parent=0
    _
  %s5 = ssub.s32 1, %s3
  %s6 = scalar_select 0, %s5, %s3
  $region1: #{tpu_custom_call.1} parent=0
    #allocation2 [shape = 'u8[8192]{0}', space=vmem, size = 0x2000, scoped, tag = 'input window, operand 0']
    #allocation3 [shape = 's32[2]{0}', space=sflag, size = 0x8, scoped, tag = 'scoped memory for tpu_custom_call.1']
    #allocation4 [shape = 's32[2]{0}', space=sflag, size = 0x8, scoped, tag = 'scoped memory for tpu_custom_call.1']
    #allocation5 [shape = 'u8[2048]{0}', space=vmem, size = 0x800, scoped, tag = 'input window, operand 1']
    #allocation6 [shape = 's32[2]{0}', space=sflag, size = 0x8, scoped, tag = 'scoped memory for tpu_custom_call.1']
    #allocation7 [shape = 'u8[1024]{0}', space=vmem, size = 0x400, scoped, tag = 'output window, operand 0']
    %7 = vsyncpa [#allocation3], 0
    %s8 = scalar_lea.sflag [#allocation3], 1
    %9 = vsyncpa %s8, 0
    %10 = vsyncpa [#allocation6], 0
    %s11 = scalar_lea.sflag [#allocation6], 1
    %12 = vsyncpa %s11, 0
    %13 = vsyncpa [#allocation4], 0
    %s14 = scalar_lea.sflag [#allocation4], 1
    %15 = vsyncpa %s14, 0
    loop: start=0, step=1, limit=4
    $region2: #{tpu_custom_call.1} parent=1 // loop_pre_header
      _
    $region3: #{tpu_custom_call.1} parent=1 // loop_header
      %s17 = sphi 0, %s21
      %p18 = scmp.ge.s32.totalorder %s17, 4
      %s24 = sphi 0, %s36
      %s25 = sphi 0, %s32
      %s26 = sphi 0, %s24
      %s27 = sphi 0, %s25
      %s28 = sphi 0, %s26
      %s29 = sphi 0, %s27
      %s41 = sphi 0, %s43
      %s44 = sphi 0, %s41
      %s45 = sphi 0, %s44
      %s61 = sphi 0, %s45
      %s69 = sphi 0, %s71
      %s72 = sphi 0, %s69
      %s73 = sphi 0, %s72
      %s89 = sphi 0, %s73
      %s97 = sphi 0, %s99
      %s100 = sphi 0, %s97
      %s101 = sphi 0, %s100
      %s117 = sphi 0, %s101
    $region4: #{tpu_custom_call.1} parent=1 // loop_header_branch
      %20 = sbr.rel (%p18) target = $region8
    $region5: #{tpu_custom_call.1} parent=1 // loop_body
      %s22 = ssub.s32 %s17, 1
      %s23 = ssub.s32 %s17, 2
      %s30 = sadd.s32 1, %s25
      %p31 = scmp.ge.s32.totalorder %s30, 1
      %s32 = scalar_select %p31, 0, %s30
      %s33 = sadd.s32 1, %s24
      %s34 = scalar_select %p31, %s33, %s24
      %p35 = scmp.ge.s32.totalorder %s34, 2
      %s36 = scalar_select %p35, 0, %s34
      %s37 = ssub.s32 %s24, %s36
      %s38 = ssub.s32 %s25, %s32
      %s39 = sor.u32 %s37, %s38
      %p40 = scmp.eq.s32.totalorder %s39, 0
      %s42 = sadd.s32 %s41, 1
      %s43 = scalar_select %p40, %s41, %s42
      %p46 = pneg %p40
      %p47 = scmp.eq.s32.totalorder %s17, 1
      %p48 = por %p46, %p47
      %p49 = scmp.ne.s32.totalorder %s41, %s44
      %p50 = scmp.eq.s32.totalorder %s17, 0
      %p51 = por %p49, %p50
      %p52 = scmp.ne.s32.totalorder %s41, %s44
      %p53 = scmp.eq.s32.totalorder %s22, 1
      %p54 = por %p52, %p53
      %p55 = scmp.ne.s32.totalorder %s44, %s45
      %p56 = scmp.eq.s32.totalorder %s22, 0
      %p57 = por %p55, %p56
      %p58 = scmp.ne.s32.totalorder %s44, %s45
      %p59 = scmp.eq.s32.totalorder %s23, 1
      %p60 = por %p58, %p59
      %p62 = scmp.ne.s32.totalorder %s45, %s61
      %p63 = scmp.eq.s32.totalorder %s23, 0
      %p64 = por %p62, %p63
      %s65 = ssub.s32 %s24, %s36
      %s66 = ssub.s32 %s25, %s32
      %s67 = sor.u32 %s65, %s66
      %p68 = scmp.eq.s32.totalorder %s67, 0
      %s70 = sadd.s32 %s69, 1
      %s71 = scalar_select %p68, %s69, %s70
      %p74 = pneg %p68
      %p75 = scmp.eq.s32.totalorder %s17, 1
      %p76 = por %p74, %p75
      %p77 = scmp.ne.s32.totalorder %s69, %s72
      %p78 = scmp.eq.s32.totalorder %s17, 0
      %p79 = por %p77, %p78
      %p80 = scmp.ne.s32.totalorder %s69, %s72
      %p81 = scmp.eq.s32.totalorder %s22, 1
      %p82 = por %p80, %p81
      %p83 = scmp.ne.s32.totalorder %s72, %s73
      %p84 = scmp.eq.s32.totalorder %s22, 0
      %p85 = por %p83, %p84
      %p86 = scmp.ne.s32.totalorder %s72, %s73
      %p87 = scmp.eq.s32.totalorder %s23, 1
      %p88 = por %p86, %p87
      %p90 = scmp.ne.s32.totalorder %s73, %s89
      %p91 = scmp.eq.s32.totalorder %s23, 0
      %p92 = por %p90, %p91
      %s93 = ssub.s32 %s24, %s36
      %s94 = ssub.s32 %s25, %s32
      %s95 = sor.u32 %s93, %s94
      %p96 = scmp.eq.s32.totalorder %s95, 0
      %s98 = sadd.s32 %s97, 1
      %s99 = scalar_select %p96, %s97, %s98
      %p102 = pneg %p96
      %p103 = scmp.eq.s32.totalorder %s17, 1
      %p104 = por %p102, %p103
      %p105 = scmp.ne.s32.totalorder %s97, %s100
      %p106 = scmp.eq.s32.totalorder %s17, 0
      %p107 = por %p105, %p106
      %p108 = scmp.ne.s32.totalorder %s97, %s100
      %p109 = scmp.eq.s32.totalorder %s22, 1
      %p110 = por %p108, %p109
      %p111 = scmp.ne.s32.totalorder %s100, %s101
      %p112 = scmp.eq.s32.totalorder %s22, 0
      %p113 = por %p111, %p112
      %p114 = scmp.ne.s32.totalorder %s100, %s101
      %p115 = scmp.eq.s32.totalorder %s23, 1
      %p116 = por %p114, %p115
      %p118 = scmp.ne.s32.totalorder %s101, %s117
      %p119 = scmp.eq.s32.totalorder %s23, 0
      %p120 = por %p118, %p119
      %p121 = scmp.le.s32.totalorder 1, %s17
      %p122 = scmp.lt.s32.totalorder %s17, 3
      %p123 = pnand %p121, %p122
      %p124 = pneg %p123
      // Predicated region
      $region9: #{tpu_custom_call.1} parent=5 // pred_check
        _
      $region10: #{tpu_custom_call.1} parent=5 // pred_check_branch
        %126 = sbr.rel (%p123) target = $region12
      $region11: #{tpu_custom_call.1} parent=5 // pred_region
        %s127 = ssub.s32 %s17, 1
      $region12: #{tpu_custom_call.1} parent=5 // pred_fallthru
        _
      %p128 = scmp.lt.s32.totalorder %s17, 2
      // Predicated region
      $region13: #{tpu_custom_call.1} parent=5 // pred_check
        %p129 = pneg %p128
      $region14: #{tpu_custom_call.1} parent=5 // pred_check_branch
        %131 = sbr.rel (%p129) target = $region16
      $region15: #{tpu_custom_call.1} parent=5 // pred_region
        // Predicated region
        $region17: #{tpu_custom_call.1} parent=15 // pred_check
          %p132 = pneg %p51
        $region18: #{tpu_custom_call.1} parent=15 // pred_check_branch
          %134 = sbr.rel (%p132) target = $region20
        $region19: #{tpu_custom_call.1} parent=15 // pred_region
          %s135 = sand.u32 %s41, 1
          %s136 = scalar_lea.sflag [#allocation3], %s135
          %s137 = sand.u32 %s41, 1
          %s138 = smul.addr %s137, 8
          %s139 = scalar_lea.vmem [#allocation2], %s138
          %s140 = smul.u32 2, %s25
          %142 = vsyncadd %s136, 0
          %s143 = smul.addr %s24, 2
          %s144 = sadd.s32 %s140, %s143
          %s145 = smul.addr %s144, 4
          %s146 = scalar_lea.hbm %s0, %s145
          %s148 = sshll.u32 %s146, 4
          %s149 = int_to_ptr.hbm [resolvable:$true] %s148
          %s150 = sshll.u32 %s139, 4
          %s151 = int_to_ptr.vmem [resolvable:$true] %s150
          %153 = dma.hbm_to_vmem [thread:$0]  %s149, 128, %s151, %s136
        $region20: #{tpu_custom_call.1} parent=15 // pred_fallthru
          _
        // Predicated region
        $region21: #{tpu_custom_call.1} parent=15 // pred_check
          %p154 = pneg %p79
        $region22: #{tpu_custom_call.1} parent=15 // pred_check_branch
          %156 = sbr.rel (%p154) target = $region24
        $region23: #{tpu_custom_call.1} parent=15 // pred_region
          %s157 = sand.u32 %s69, 1
          %s158 = scalar_lea.sflag [#allocation6], %s157
          %s159 = sand.u32 %s69, 1
          %s160 = smul.addr %s159, 2
          %s161 = scalar_lea.vmem [#allocation5], %s160
          %s162 = smul.u32 2, %s25
          %164 = vsyncadd %s158, 0
          %s165 = smul.addr %s24, 2
          %s166 = sadd.s32 %s162, %s165
          %s167 = scalar_lea.hbm %s1, %s166
          %s169 = sshll.u32 %s167, 4
          %s170 = int_to_ptr.hbm [resolvable:$true] %s169
          %s171 = sshll.u32 %s161, 4
          %s172 = int_to_ptr.vmem [resolvable:$true] %s171
          %174 = dma.hbm_to_vmem [thread:$0]  %s170, 32, %s172, %s158
        $region24: #{tpu_custom_call.1} parent=15 // pred_fallthru
          _
      $region16: #{tpu_custom_call.1} parent=5 // pred_fallthru
        _
      %p175 = scmp.le.s32.totalorder 1, %s17
      %p176 = scmp.lt.s32.totalorder %s17, 3
      %p177 = pnand %p175, %p176
      %p178 = pneg %p177
      // Predicated region
      $region25: #{tpu_custom_call.1} parent=5 // pred_check
        _
      $region26: #{tpu_custom_call.1} parent=5 // pred_check_branch
        %180 = sbr.rel (%p177) target = $region28
      $region27: #{tpu_custom_call.1} parent=5 // pred_region
        %s181 = ssub.s32 %s17, 1
        %s182 = sand.u32 %s44, 1
        %s183 = scalar_lea.sflag [#allocation3], %s182
        %s184 = sand.u32 %s44, 1
        %s185 = smul.addr %s184, 8
        %s186 = scalar_lea.vmem [#allocation2], %s185
        // Predicated region
        $region29: #{tpu_custom_call.1} parent=27 // pred_check
          %p187 = pneg %p57
        $region30: #{tpu_custom_call.1} parent=27 // pred_check_branch
          %189 = sbr.rel (%p187) target = $region32
        $region31: #{tpu_custom_call.1} parent=27 // pred_region
          %191 = dma.done %s183, 128
        $region32: #{tpu_custom_call.1} parent=27 // pred_fallthru
          _
        %s192 = sand.u32 %s72, 1
        %s193 = scalar_lea.sflag [#allocation6], %s192
        %s194 = sand.u32 %s72, 1
        %s195 = smul.addr %s194, 2
        %s196 = scalar_lea.vmem [#allocation5], %s195
        // Predicated region
        $region33: #{tpu_custom_call.1} parent=27 // pred_check
          %p197 = pneg %p85
        $region34: #{tpu_custom_call.1} parent=27 // pred_check_branch
          %199 = sbr.rel (%p197) target = $region36
        $region35: #{tpu_custom_call.1} parent=27 // pred_region
          %201 = dma.done %s193, 32
        $region36: #{tpu_custom_call.1} parent=27 // pred_fallthru
          _
        %s202 = sand.u32 %s44, 1
        %s203 = scalar_lea.sflag [#allocation3], %s202
        %s204 = sand.u32 %s44, 1
        %s205 = smul.addr %s204, 8
        %s206 = scalar_lea.vmem [#allocation2], %s205
        %p207 = pneg %p57
        %p208 = pneg %p54
        %s209 = sand.u32 %s72, 1
        %s210 = scalar_lea.sflag [#allocation6], %s209
        %s211 = sand.u32 %s72, 1
        %s212 = smul.addr %s211, 2
        %s213 = scalar_lea.vmem [#allocation5], %s212
        %p214 = pneg %p85
        %p215 = pneg %p82
        %p216 = pneg %p113
        %p217 = pneg %p110
        %s218 = sand.u32 %s100, 1
        %s219 = scalar_lea.sflag [#allocation4], %s218
        %s220 = sand.u32 %s100, 1
        %s221 = scalar_lea.vmem [#allocation7], %s220
        %s222 = smul.u32 2, %s27
        %s223 = smul.u32 2, %s27
        %v224 = vld [vmem:[%s186] sm:$0xff]
        %v225 = vld [vmem:[%s196] sm:$0x3]
        %s226 = smul.u32 %s27, 256
        %v227 = vlaneseq
        %v228 = vand.u32 %v227, 127
        %v229 = vadd.s32 %v228, 128
        %v230 = vstv %s226
        %v231 = vadd.s32 %v230, %v228
        %v232 = vadd.s32 %v230, %v229
        %vm233 = vcmp.ne.s32.totalorder %v225, 255
        %vm234 = vcmp.lt.s32.totalorder %v231, 256
        %vm235 = vcmp.lt.s32.totalorder %v232, 256
        %v236 = vsel %vm234, 1, 0
        %v237 = vsel %vm235, 1, 0
        %v238 = vrot.slane %v237, 7
        %vm239 = vcmask 1040384
        %v240 = vsel %vm239, %v236, %v238
        %vm241 = vcmp.ne.s32.totalorder %v240, 0
        %vm242 = vmand %vm233, %vm241
        %244 = vst [vmem:[#allocation1] ss:$2 sm:$0xff] %v224
        %v245 = vld.sshfl [vmem:[#allocation1] sm:$0xff pattern:$0x75316420]
        %v246 = vld.sshfl [vmem:[#allocation1 + $0x8] sm:$0xff pattern:$0x75316420]
        %vm249 = vcmask 1043456
        %v250 = vsel %vm249, %v245, -inf
        %v251 = vrot.slane %v250, 4
        %v252 = vmax.f32 %v250, %v251
        %v253 = vrot.slane %v252, 2
        %v254 = vmax.f32 %v252, %v253
        %v255 = vrot.slane %v254, 1
        %v256 = vmax.f32 %v254, %v255
        %v257 = vsel %vm249, %v246, -inf
        %v258 = vrot.slane %v257, 4
        %v259 = vmax.f32 %v257, %v258
        %v260 = vrot.slane %v259, 2
        %v261 = vmax.f32 %v259, %v260
        %v262 = vrot.slane %v261, 1
        %v263 = vmax.f32 %v261, %v262
        %v266 = vrot.slane %v263, 4
        %v267 = vsel %vm249, %v256, %v266
        %v269 = vsub.f32 %v224, %v267
        %v270 = vmul.f32 %v269, 1.442695
        %v271 = vpow.pop %v270
        %273 = vst [vmem:[#allocation1] ss:$2 sm:$0xff] %v271
        %v274 = vld.sshfl [vmem:[#allocation1] sm:$0xff pattern:$0x75316420]
        %v275 = vld.sshfl [vmem:[#allocation1 + $0x8] sm:$0xff pattern:$0x75316420]
        %v278 = vsel %vm249, %v274, 0.0
        %v279 = vrot.slane %v278, 4
        %v280 = vadd.f32 %v278, %v279
        %v281 = vrot.slane %v280, 2
        %v282 = vadd.f32 %v280, %v281
        %v283 = vrot.slane %v282, 1
        %v284 = vadd.f32 %v282, %v283
        %v285 = vsel %vm249, %v275, 0.0
        %v286 = vrot.slane %v285, 4
        %v287 = vadd.f32 %v285, %v286
        %v288 = vrot.slane %v287, 2
        %v289 = vadd.f32 %v287, %v288
        %v290 = vrot.slane %v289, 1
        %v291 = vadd.f32 %v289, %v290
        %v292 = vlaneseq
        %v293 = vshrl.u32 %v292, 7
        %v294 = vperm.slane %v225, 0
        %v295 = vperm.slane %v225, 1
        %vm296 = vcmp.eq.s32.totalorder %v293, %v294
        %vm297 = vcmp.eq.s32.totalorder %v293, %v295
        %298 = vst [vmem:[#allocation1] ss:$2 sm:$0xff] %v271
        %v299 = vld.sshfl [vmem:[#allocation1] sm:$0xff pattern:$0x75316420]
        %v300 = vld.sshfl [vmem:[#allocation1 + $0x8] sm:$0xff pattern:$0x75316420]
        %v303 = vsel %vm296, %v299, 0.0
        %v304 = vsel %vm297, %v300, 0.0
        %v305 = vsel %vm249, %v303, 0.0
        %v306 = vrot.slane %v305, 4
        %v307 = vadd.f32 %v305, %v306
        %v308 = vrot.slane %v307, 2
        %v309 = vadd.f32 %v307, %v308
        %v310 = vrot.slane %v309, 1
        %v311 = vadd.f32 %v309, %v310
        %v312 = vsel %vm249, %v304, 0.0
        %v313 = vrot.slane %v312, 4
        %v314 = vadd.f32 %v312, %v313
        %v315 = vrot.slane %v314, 2
        %v316 = vadd.f32 %v314, %v315
        %v317 = vrot.slane %v316, 1
        %v318 = vadd.f32 %v316, %v317
        %v319 = vmax.f32 %v311, 1e-37
        %v320 = vmax.f32 %v318, 1e-37
        %v321 = vlog2.pop %v284
        %v322 = vmul.f32 %v321, 0.6931472
        %v323 = vlog2.pop %v291
        %v324 = vmul.f32 %v323, 0.6931472
        %v325 = vlog2.pop %v319
        %v326 = vmul.f32 %v325, 0.6931472
        %v327 = vlog2.pop %v320
        %v328 = vmul.f32 %v327, 0.6931472
        %v329 = vsub.f32 %v322, %v326
        %v330 = vsub.f32 %v324, %v328
        %v331 = vrcp.pop %v284
        %v332 = vmul.f32 %v284, %v331
        %v333 = vsub.f32 1.0, %v332
        %v334 = vmul.f32 %v331, %v333
        %v335 = vadd.f32 %v331, %v334
        %vm336 = vweird.f32 %v284
        %vm337 = vweird.f32 %v331
        %vm338 = vmor %vm336, %vm337
        %v339 = vsel %vm338, %v331, %v335
        %v340 = vand.u32 2147483647, %v284
        %vm341 = vcmp.eq.f32.partialorder %v340, 8.507059e+37
        %v342 = vand.u32 %v284, 2147483648
        %v343 = vor.u32 1.1754944e-38, %v342
        %v344 = vsel %vm341, %v343, %v339
        %v345 = vrcp.pop %v291
        %v346 = vmul.f32 %v291, %v345
        %v347 = vsub.f32 1.0, %v346
        %v348 = vmul.f32 %v345, %v347
        %v349 = vadd.f32 %v345, %v348
        %vm350 = vweird.f32 %v291
        %vm351 = vweird.f32 %v345
        %vm352 = vmor %vm350, %vm351
        %v353 = vsel %vm352, %v345, %v349
        %v354 = vand.u32 2147483647, %v291
        %vm355 = vcmp.eq.f32.partialorder %v354, 8.507059e+37
        %v356 = vand.u32 %v291, 2147483648
        %v357 = vor.u32 1.1754944e-38, %v356
        %v358 = vsel %vm355, %v357, %v353
        %v359 = vmul.f32 %v319, %v344
        %v360 = vmul.f32 %v320, %v358
        %v361 = vsub.f32 1.0, %v359
        %v362 = vsub.f32 1.0, %v360
        %v363 = vmul.f32 %v361, %v361
        %v364 = vmul.f32 %v362, %v362
        %v365 = vmul.f32 %v363, %v329
        %v366 = vmul.f32 %v364, %v330
        %v369 = vrot.slane %v366, 7
        %v370 = vsel %vm239, %v365, %v369
        %v372 = vsel %vm242, %v370, 0.0
        %v374 = vperm.slane %v372, 0
        %v375 = vperm.slane %v372, 1
        %v378 = vsel %vm239, %v374, 0.0
        %v379 = vsel %vm239, %v375, 0.0
        %v380 = vadd.f32 %v378, %v379
        %381 = vadd.xlane.f32.xlu0 %v380
        %v382 = vpop.xlane.xlu0 %381
        %vm383 = vcmp.eq.s32.totalorder %v228, 0
        %v384 = vsel %vm383, %v382, 0.0
        %385 = vst [vmem:[%s221] sm:$0x1] %v384
        %s386 = sand.u32 %s100, 1
        %s387 = scalar_lea.sflag [#allocation4], %s386
        %s388 = sand.u32 %s100, 1
        %s389 = scalar_lea.vmem [#allocation7], %s388
        // Predicated region
        $region37: #{tpu_custom_call.1} parent=27 // pred_check
          %p390 = pneg %p110
        $region38: #{tpu_custom_call.1} parent=27 // pred_check_branch
          %392 = sbr.rel (%p390) target = $region40
        $region39: #{tpu_custom_call.1} parent=27 // pred_region
          %394 = vsyncadd %s387, 0
          %s395 = sadd.s32 %s27, %s26
          %s396 = scalar_lea.hbm %s2, %s395
          %s398 = sshll.u32 %s389, 4
          %s399 = int_to_ptr.vmem [resolvable:$true] %s398
          %s400 = sshll.u32 %s396, 4
          %s401 = int_to_ptr.hbm [resolvable:$true] %s400
          %403 = dma.vmem_to_hbm [thread:$0]  %s399, 16, %s401, %s387
        $region40: #{tpu_custom_call.1} parent=27 // pred_fallthru
          _
      $region28: #{tpu_custom_call.1} parent=5 // pred_fallthru
        _
      %p404 = scmp.le.s32.totalorder 2, %s17
      // Predicated region
      $region41: #{tpu_custom_call.1} parent=5 // pred_check
        %p405 = pneg %p404
      $region42: #{tpu_custom_call.1} parent=5 // pred_check_branch
        %407 = sbr.rel (%p405) target = $region44
      $region43: #{tpu_custom_call.1} parent=5 // pred_region
        %s408 = ssub.s32 %s17, 2
        // Predicated region
        $region45: #{tpu_custom_call.1} parent=43 // pred_check
          %p409 = pneg %p116
        $region46: #{tpu_custom_call.1} parent=43 // pred_check_branch
          %411 = sbr.rel (%p409) target = $region48
        $region47: #{tpu_custom_call.1} parent=43 // pred_region
          %s412 = sand.u32 %s101, 1
          %s413 = scalar_lea.sflag [#allocation4], %s412
          %s414 = sand.u32 %s101, 1
          %s415 = scalar_lea.vmem [#allocation7], %s414
          %417 = dma.done %s413, 16
        $region48: #{tpu_custom_call.1} parent=43 // pred_fallthru
          _
      $region44: #{tpu_custom_call.1} parent=5 // pred_fallthru
        _
    $region6: #{tpu_custom_call.1} parent=1 // loop_footer
      %s21 = sadd.s32 1, %s17
    $region7: #{tpu_custom_call.1} parent=1 // loop_footer_branch
      %16 = sbr.rel target = $region3
    $region8: #{tpu_custom_call.1} parent=1 // loop_exit
      _
    %418 = vsyncpa [#allocation3], 1
    %s419 = scalar_lea.sflag [#allocation3], 1
    %420 = vsyncpa %s419, 1
    %421 = vsyncpa [#allocation6], 1
    %s422 = scalar_lea.sflag [#allocation6], 1
    %423 = vsyncpa %s422, 1
    %424 = vsyncpa [#allocation4], 1
    %s425 = scalar_lea.sflag [#allocation4], 1
    %426 = vsyncpa %s425, 1

</llo_original>
